<compile_context>
chip_gen: v7x
topology: tpu7x:2x2x1
jax: 0.10.0
libtpu: 0.0.40
codegen_flags: <defaults>
</compile_context>

<pallas_src>
import functools

import jax
import jax.numpy as jnp
from jax import lax
from jax.experimental import pallas as pl
from jax.experimental.pallas import tpu as pltpu

THRESH = 0.3
DECAY = 0.2
KSIZE = 3  # kernel_size=3, padding=1, stride=1


# ---------------------------------------------------------------------------
# Kernels: one batch element per grid step, channels in sublanes, DHW in lanes.
# ---------------------------------------------------------------------------
def _snn_kernel_nomem(xcol_ref, w_ref, b_ref, spike_ref, memout_ref):
    """mem is None: mem = conv(input).

    xcol_ref:   (1, K, DHW)   im2col input, K = Cin*27
    w_ref:      (Cout, K)     flattened conv weight
    b_ref:      (Cout, 1)     conv bias (broadcast along lanes)
    spike_ref:  (1, Cout, DHW)
    memout_ref: (1, Cout, DHW)
    """
    conv = jnp.dot(w_ref[...], xcol_ref[0], preferred_element_type=jnp.float32)
    mem = conv + b_ref[...]                      # (Cout, DHW)
    spike = (mem > THRESH).astype(jnp.float32)   # ActFun_b5.forward
    spike_ref[0] = spike
    memout_ref[0] = mem * DECAY * (1.0 - spike)


def _snn_kernel_mem(xcol_ref, w_ref, b_ref, memin_ref, spike_ref, memout_ref):
    """mem provided: mem = mem_in + conv(input)."""
    conv = jnp.dot(w_ref[...], xcol_ref[0], preferred_element_type=jnp.float32)
    mem = memin_ref[0] + conv + b_ref[...]
    spike = (mem > THRESH).astype(jnp.float32)
    spike_ref[0] = spike
    memout_ref[0] = mem * DECAY * (1.0 - spike)


# ---------------------------------------------------------------------------
# Wrapper
# ---------------------------------------------------------------------------
def snn_single_conv3d_forward(x_ncdhw, weight, bias, mem=None):
    """Forward pass of SCNN_single_conv_big_forloop_3d_b5.

    x_ncdhw : (N, Cin, D, H, W) float32
    weight  : (Cout, Cin, 3, 3, 3) float32   (torch Conv3d layout)
    bias    : (Cout,) float32
    mem     : optional (N, Cout, D, H, W) float32
    returns : (spike, mem) each (N, Cout, D, H, W) float32
    """
    N, Cin, D, H, W = x_ncdhw.shape
    Cout = weight.shape[0]
    DHW = D * H * W
    K = Cin * KSIZE ** 3  # contraction depth (108 for Cin=4)

    x = x_ncdhw.astype(jnp.float32)
    # Zero padding=1 on the three spatial dims, then im2col:
    #   (N, Cin, 27, D, H, W) -> (N, Cin*27, DHW), tap order (kd, kh, kw)
    # matching weight.reshape(Cout, Cin*27).
    xp = jnp.pad(x, ((0, 0), (0, 0), (1, 1), (1, 1), (1, 1)))
    taps = [xp[:, :, kd:kd + D, kh:kh + H, kw:kw + W]
            for kd in range(KSIZE) for kh in range(KSIZE) for kw in range(KSIZE)]
    xcol = jnp.stack(taps, axis=2).reshape(N, K, DHW)

    w_flat = weight.astype(jnp.float32).reshape(Cout, K)   # (Cout, Cin*27)
    b_col = bias.astype(jnp.float32).reshape(Cout, 1)

    out_shape = (jax.ShapeDtypeStruct((N, Cout, DHW), jnp.float32),
                 jax.ShapeDtypeStruct((N, Cout, DHW), jnp.float32))
    out_specs = (pl.BlockSpec((1, Cout, DHW), lambda n: (n, 0, 0)),
                 pl.BlockSpec((1, Cout, DHW), lambda n: (n, 0, 0)))
    in_specs = [
        pl.BlockSpec((1, K, DHW), lambda n: (n, 0, 0)),   # im2col input
        pl.BlockSpec((Cout, K), lambda n: (0, 0)),        # weight (constant block)
        pl.BlockSpec((Cout, 1), lambda n: (0, 0)),        # bias   (constant block)
    ]
    cparams = pltpu.CompilerParams(dimension_semantics=("parallel",))

    if mem is None:
        # Specialized kernel: no zero-filled membrane stream through HBM.
        spike, mem_out = pl.pallas_call(
            _snn_kernel_nomem,
            out_shape=out_shape,
            grid=(N,),
            in_specs=in_specs,
            out_specs=out_specs,
            compiler_params=cparams,
        )(xcol, w_flat, b_col)
    else:
        mem_flat = mem.astype(jnp.float32).reshape(N, Cout, DHW)  # free reshape
        spike, mem_out = pl.pallas_call(
            _snn_kernel_mem,
            out_shape=out_shape,
            grid=(N,),
            in_specs=in_specs + [pl.BlockSpec((1, Cout, DHW), lambda n: (n, 0, 0))],
            out_specs=out_specs,
            compiler_params=cparams,
        )(xcol, w_flat, b_col, mem_flat)

    # (N, Cout, DHW) -> (N, Cout, D, H, W): pure reshape, no HBM transpose pass.
    return (spike.reshape(N, Cout, D, H, W),
            mem_out.reshape(N, Cout, D, H, W))


# ---------------------------------------------------------------------------
# Pure-JAX reference (lax.conv) for correctness check.
# ---------------------------------------------------------------------------
def _reference_forward(x, weight, bias, mem=None):
    conv = lax.conv_general_dilated(
        x, weight, window_strides=(1, 1, 1), padding=[(1, 1)] * 3,
        dimension_numbers=("NCDHW", "OIDHW", "NCDHW"))
    conv = conv + bias.reshape(1, -1, 1, 1, 1)
    m = conv if mem is None else mem + conv
    spike = (m > THRESH).astype(jnp.float32)
    return spike, m * DECAY * (1.0 - spike), m  # also return pre-activation mem


def _check(spike, mem_out, ref_spike, ref_mem, ref_pre, tag):
    # Mask elements sitting (numerically) on the threshold: a different but
    # equally valid accumulation order can flip those, which is not a bug.
    mask = jnp.abs(ref_pre - THRESH) > 1e-4
    assert jnp.array_equal(jnp.where(mask, spike, 0.0),
                           jnp.where(mask, ref_spike, 0.0)), f"spike mismatch ({tag})"
    assert jnp.allclose(jnp.where(mask, mem_out, 0.0),
                        jnp.where(mask, ref_mem, 0.0),
                        atol=1e-4), f"mem mismatch ({tag})"


if __name__ == "__main__":
    key = jax.random.PRNGKey(0)
    k_x, k_w, k_b, k_m = jax.random.split(key, 4)

    # Small shapes consistent with the module: batch=2, Cin=4, Cout=8, D=H=W=8
    N, Cin, Cout, D, H, W = 2, 4, 8, 8, 8, 8

    x = jax.random.normal(k_x, (N, Cin, D, H, W), dtype=jnp.float32)
    fan_in = Cin * KSIZE ** 3
    weight = jax.random.normal(k_w, (Cout, Cin, KSIZE, KSIZE, KSIZE),
                               dtype=jnp.float32) * (1.0 / fan_in) ** 0.5
    bias = jax.random.normal(k_b, (Cout,), dtype=jnp.float32) * 0.01

    # --- case 1: mem=None (specialized kernel path) ---
    spike, mem_out = snn_single_conv3d_forward(x, weight, bias, mem=None)
    spike = jax.block_until_ready(spike)
    mem_out = jax.block_until_ready(mem_out)
    ref_spike, ref_mem, ref_pre = _reference_forward(x, weight, bias, mem=None)
    _check(spike, mem_out, ref_spike, ref_mem, ref_pre, "mem=None")

    # --- case 2: mem provided ---
    mem0 = jax.random.normal(k_m, (N, Cout, D, H, W), dtype=jnp.float32) * 0.1
    spike2, mem_out2 = snn_single_conv3d_forward(x, weight, bias, mem=mem0)
    spike2 = jax.block_until_ready(spike2)
    mem_out2 = jax.block_until_ready(mem_out2)
    ref_spike2, ref_mem2, ref_pre2 = _reference_forward(x, weight, bias, mem=mem0)
    _check(spike2, mem_out2, ref_spike2, ref_mem2, ref_pre2, "mem provided")

    print("KERNEL_OK")
</pallas_src>

<mosaic_0001>
module attributes {stable_mosaic.version = 11 : i64} {
  func.func @_snn_kernel_nomem(%arg0: i32, %arg1: memref<1x108x512xf32, #tpu.memory_space<vmem>>, %arg2: memref<8x108xf32, #tpu.memory_space<vmem>>, %arg3: memref<8x1xf32, #tpu.memory_space<vmem>>, %arg4: memref<1x8x512xf32, #tpu.memory_space<vmem>>, %arg5: memref<1x8x512xf32, #tpu.memory_space<vmem>>) attributes {dimension_semantics = [#tpu.dimension_semantics<parallel>], iteration_bounds = array<i64: 2>, scalar_prefetch = 0 : i64, scratch_operands = 0 : i64, tpu.core_type = #tpu.core_type<tc>, window_params = [{transform_indices = @transform_0, window_bounds = array<i64: 1, 108, 512>}, {pipeline_mode = #tpu.pipeline_mode<synchronous>, transform_indices = @transform_1, window_bounds = array<i64: 8, 108>}, {pipeline_mode = #tpu.pipeline_mode<synchronous>, transform_indices = @transform_2, window_bounds = array<i64: 8, 1>}, {transform_indices = @transform_3, window_bounds = array<i64: 1, 8, 512>}, {transform_indices = @transform_4, window_bounds = array<i64: 1, 8, 512>}]} {
    %c0 = arith.constant 0 : index
    %c0_0 = arith.constant 0 : index
    %0 = vector.load %arg2[%c0, %c0_0] : memref<8x108xf32, #tpu.memory_space<vmem>>, vector<8x108xf32>
    %c0_1 = arith.constant 0 : index
    %c0_2 = arith.constant 0 : index
    %c0_3 = arith.constant 0 : index
    %1 = vector.load %arg1[%c0_1, %c0_2, %c0_3] : memref<1x108x512xf32, #tpu.memory_space<vmem>>, vector<1x108x512xf32>
    %2 = vector.shape_cast %1 : vector<1x108x512xf32> to vector<108x512xf32>
    %cst = arith.constant dense<0.000000e+00> : vector<8x512xf32>
    %3 = tpu.matmul %0, %2, %cst {dimension_numbers = #tpu.dot_dimension_numbers<[1], [0], [0], [1], [0, 0, 1, 1], [], []>} : vector<8x108xf32>, vector<108x512xf32>, vector<8x512xf32> -> vector<8x512xf32>
    %c0_4 = arith.constant 0 : index
    %c0_5 = arith.constant 0 : index
    %4 = vector.load %arg3[%c0_4, %c0_5] : memref<8x1xf32, #tpu.memory_space<vmem>>, vector<8x1xf32>
    %5 = vector.broadcast %4 : vector<8x1xf32> to vector<8x512xf32>
    %6 = arith.addf %3, %5 : vector<8x512xf32>
    %cst_6 = arith.constant 3.000000e-01 : f32
    %7 = vector.broadcast %cst_6 : f32 to vector<8x512xf32>
    %8 = arith.cmpf ogt, %6, %7 : vector<8x512xf32>
    %9 = arith.extui %8 : vector<8x512xi1> to vector<8x512xi32>
    %10 = arith.sitofp %9 : vector<8x512xi32> to vector<8x512xf32>
    %c0_7 = arith.constant 0 : index
    %c0_8 = arith.constant 0 : index
    %c0_9 = arith.constant 0 : index
    %11 = vector.load %arg4[%c0_7, %c0_8, %c0_9] : memref<1x8x512xf32, #tpu.memory_space<vmem>>, vector<1x8x512xf32>
    %12 = vector.shape_cast %11 : vector<1x8x512xf32> to vector<8x512xf32>
    %13 = vector.shape_cast %10 : vector<8x512xf32> to vector<1x8x512xf32>
    tpu.vector_store %arg4[%c0_7, %c0_8, %c0_9], %13 {strides = array<i32>} : memref<1x8x512xf32, #tpu.memory_space<vmem>>, vector<1x8x512xf32>,
    %cst_10 = arith.constant 2.000000e-01 : f32
    %14 = vector.broadcast %cst_10 : f32 to vector<8x512xf32>
    %15 = arith.mulf %6, %14 : vector<8x512xf32>
    %cst_11 = arith.constant 1.000000e+00 : f32
    %16 = vector.broadcast %cst_11 : f32 to vector<8x512xf32>
    %17 = arith.subf %16, %10 : vector<8x512xf32>
    %18 = arith.mulf %15, %17 : vector<8x512xf32>
    %c0_12 = arith.constant 0 : index
    %c0_13 = arith.constant 0 : index
    %c0_14 = arith.constant 0 : index
    %19 = vector.load %arg5[%c0_12, %c0_13, %c0_14] : memref<1x8x512xf32, #tpu.memory_space<vmem>>, vector<1x8x512xf32>
    %20 = vector.shape_cast %19 : vector<1x8x512xf32> to vector<8x512xf32>
    %21 = vector.shape_cast %18 : vector<8x512xf32> to vector<1x8x512xf32>
    tpu.vector_store %arg5[%c0_12, %c0_13, %c0_14], %21 {strides = array<i32>} : memref<1x8x512xf32, #tpu.memory_space<vmem>>, vector<1x8x512xf32>,
    return
  }
  func.func @transform_0(%arg0: i32) -> (i32, i32, i32) {
    %c0_i32 = arith.constant 0 : i32
    %c0_i32_0 = arith.constant 0 : i32
    %c0_i32_1 = arith.constant 0 : i32
    return %arg0, %c0_i32, %c0_i32_0 : i32, i32, i32
  }
  func.func @transform_1(%arg0: i32) -> (i32, i32) {
    %c0_i32 = arith.constant 0 : i32
    %c0_i32_0 = arith.constant 0 : i32
    %c0_i32_1 = arith.constant 0 : i32
    return %c0_i32, %c0_i32_0 : i32, i32
  }
  func.func @transform_2(%arg0: i32) -> (i32, i32) {
    %c0_i32 = arith.constant 0 : i32
    %c0_i32_0 = arith.constant 0 : i32
    %c0_i32_1 = arith.constant 0 : i32
    return %c0_i32, %c0_i32_0 : i32, i32
  }
  func.func @transform_3(%arg0: i32) -> (i32, i32, i32) {
    %c0_i32 = arith.constant 0 : i32
    %c0_i32_0 = arith.constant 0 : i32
    %c0_i32_1 = arith.constant 0 : i32
    return %arg0, %c0_i32, %c0_i32_0 : i32, i32, i32
  }
  func.func @transform_4(%arg0: i32) -> (i32, i32, i32) {
    %c0_i32 = arith.constant 0 : i32
    %c0_i32_0 = arith.constant 0 : i32
    %c0_i32_1 = arith.constant 0 : i32
    return %arg0, %c0_i32, %c0_i32_0 : i32, i32, i32
  }
}

</mosaic_0001>

<llo_original>
// kernel: tpu_custom_call.1
$region0: #{tpu_custom_call.1}
  #allocation0 [shape = 'u32[]', space=smem, size = 0x4, offset = 0x4, fixed_abs, tag = 'smem constant byte address 0x4 - core index']
  #allocation1 [shape = 'u32[144,128]{1,0:T(1,128)}', space=vmem, size = 0x12000, scoped, tag = 'internal scratch']
  %s0 = inlined_call_operand.vmem [shape: f32[2,108,512], index: 0, kind: input, shape index: {}]
  %s1 = inlined_call_operand.vmem [shape: f32[8,108], index: 1, kind: input, shape index: {}]
  %s2 = inlined_call_operand.vmem [shape: f32[8,1], index: 2, kind: input, shape index: {}]
  %s3 = inlined_call_operand.hbm [shape: f32[2,8,512], index: 3, kind: output, shape index: {0}]
  %s4 = inlined_call_operand.hbm [shape: f32[2,8,512], index: 4, kind: output, shape index: {1}]
  %5 = xla_tuple %s3, %s4
  %s6 = sld [smem:[#allocation0]]
  $region53: #{tpu_custom_call.1} parent=0
    _
  %s8 = ssub.s32 1, %s6
  %s9 = scalar_select 0, %s8, %s6
  $region1: #{tpu_custom_call.1} parent=0
    #allocation2 [shape = 'u8[32768]{0}', space=vmem, size = 0x8000, scoped, tag = 'output window, operand 0']
    #allocation3 [shape = 's32[2]{0}', space=sflag, size = 0x8, scoped, tag = 'scoped memory for tpu_custom_call.1']
    #allocation4 [shape = 'u8[32768]{0}', space=vmem, size = 0x8000, scoped, tag = 'output window, operand 1']
    #allocation5 [shape = 's32[2]{0}', space=sflag, size = 0x8, scoped, tag = 'scoped memory for tpu_custom_call.1']
    %10 = vsyncpa [#allocation3], 0
    %s11 = scalar_lea.sflag [#allocation3], 1
    %12 = vsyncpa %s11, 0
    %13 = vsyncpa [#allocation5], 0
    %s14 = scalar_lea.sflag [#allocation5], 1
    %15 = vsyncpa %s14, 0
    loop: start=0, step=1, limit=4
    $region2: #{tpu_custom_call.1} parent=1 // loop_pre_header
      _
    $region3: #{tpu_custom_call.1} parent=1 // loop_header
      %s17 = sphi 0, %s21
      %p18 = scmp.ge.s32.totalorder %s17, 4
      %s27 = sphi 0, %s29
      %s30 = sphi 0, %s27
      %s31 = sphi 0, %s30
      %s47 = sphi 0, %s31
      %s51 = sphi 0, %s51
      %s53 = sphi 0, %s51
      %s54 = sphi 0, %s53
      %s68 = sphi 0, %s54
      %s72 = sphi 0, %s72
      %s74 = sphi 0, %s72
      %s75 = sphi 0, %s74
      %s89 = sphi 0, %s75
      %s95 = sphi 0, %s97
      %s98 = sphi 0, %s95
      %s99 = sphi 0, %s98
      %s115 = sphi 0, %s99
      %s121 = sphi 0, %s123
      %s124 = sphi 0, %s121
      %s125 = sphi 0, %s124
      %s141 = sphi 0, %s125
    $region4: #{tpu_custom_call.1} parent=1 // loop_header_branch
      %20 = sbr.rel (%p18) target = $region8
    $region5: #{tpu_custom_call.1} parent=1 // loop_body
      %s22 = ssub.s32 %s17, 1
      %s23 = ssub.s32 %s17, 2
      %s24 = sadd.s32 %s17, 1
      %s25 = ssub.s32 %s17, %s24
      %p26 = scmp.eq.s32.totalorder %s25, 0
      %s28 = sadd.s32 %s27, 1
      %s29 = scalar_select %p26, %s27, %s28
      %p32 = pneg %p26
      %p33 = scmp.eq.s32.totalorder %s17, 1
      %p34 = por %p32, %p33
      %p35 = scmp.ne.s32.totalorder %s27, %s30
      %p36 = scmp.eq.s32.totalorder %s17, 0
      %p37 = por %p35, %p36
      %p38 = scmp.ne.s32.totalorder %s27, %s30
      %p39 = scmp.eq.s32.totalorder %s22, 1
      %p40 = por %p38, %p39
      %p41 = scmp.ne.s32.totalorder %s30, %s31
      %p42 = scmp.eq.s32.totalorder %s22, 0
      %p43 = por %p41, %p42
      %p44 = scmp.ne.s32.totalorder %s30, %s31
      %p45 = scmp.eq.s32.totalorder %s23, 1
      %p46 = por %p44, %p45
      %p48 = scmp.ne.s32.totalorder %s31, %s47
      %p49 = scmp.eq.s32.totalorder %s23, 0
      %p50 = por %p48, %p49
      %s52 = sadd.s32 %s51, 1
      %p55 = scmp.eq.s32.totalorder %s17, 1
      %p56 = scmp.ne.s32.totalorder %s51, %s53
      %p57 = scmp.eq.s32.totalorder %s17, 0
      %p58 = por %p56, %p57
      %p59 = scmp.ne.s32.totalorder %s51, %s53
      %p60 = scmp.eq.s32.totalorder %s22, 1
      %p61 = por %p59, %p60
      %p62 = scmp.ne.s32.totalorder %s53, %s54
      %p63 = scmp.eq.s32.totalorder %s22, 0
      %p64 = por %p62, %p63
      %p65 = scmp.ne.s32.totalorder %s53, %s54
      %p66 = scmp.eq.s32.totalorder %s23, 1
      %p67 = por %p65, %p66
      %p69 = scmp.ne.s32.totalorder %s54, %s68
      %p70 = scmp.eq.s32.totalorder %s23, 0
      %p71 = por %p69, %p70
      %s73 = sadd.s32 %s72, 1
      %p76 = scmp.eq.s32.totalorder %s17, 1
      %p77 = scmp.ne.s32.totalorder %s72, %s74
      %p78 = scmp.eq.s32.totalorder %s17, 0
      %p79 = por %p77, %p78
      %p80 = scmp.ne.s32.totalorder %s72, %s74
      %p81 = scmp.eq.s32.totalorder %s22, 1
      %p82 = por %p80, %p81
      %p83 = scmp.ne.s32.totalorder %s74, %s75
      %p84 = scmp.eq.s32.totalorder %s22, 0
      %p85 = por %p83, %p84
      %p86 = scmp.ne.s32.totalorder %s74, %s75
      %p87 = scmp.eq.s32.totalorder %s23, 1
      %p88 = por %p86, %p87
      %p90 = scmp.ne.s32.totalorder %s75, %s89
      %p91 = scmp.eq.s32.totalorder %s23, 0
      %p92 = por %p90, %p91
      %s93 = ssub.s32 %s17, %s24
      %p94 = scmp.eq.s32.totalorder %s93, 0
      %s96 = sadd.s32 %s95, 1
      %s97 = scalar_select %p94, %s95, %s96
      %p100 = pneg %p94
      %p101 = scmp.eq.s32.totalorder %s17, 1
      %p102 = por %p100, %p101
      %p103 = scmp.ne.s32.totalorder %s95, %s98
      %p104 = scmp.eq.s32.totalorder %s17, 0
      %p105 = por %p103, %p104
      %p106 = scmp.ne.s32.totalorder %s95, %s98
      %p107 = scmp.eq.s32.totalorder %s22, 1
      %p108 = por %p106, %p107
      %p109 = scmp.ne.s32.totalorder %s98, %s99
      %p110 = scmp.eq.s32.totalorder %s22, 0
      %p111 = por %p109, %p110
      %p112 = scmp.ne.s32.totalorder %s98, %s99
      %p113 = scmp.eq.s32.totalorder %s23, 1
      %p114 = por %p112, %p113
      %p116 = scmp.ne.s32.totalorder %s99, %s115
      %p117 = scmp.eq.s32.totalorder %s23, 0
      %p118 = por %p116, %p117
      %s119 = ssub.s32 %s17, %s24
      %p120 = scmp.eq.s32.totalorder %s119, 0
      %s122 = sadd.s32 %s121, 1
      %s123 = scalar_select %p120, %s121, %s122
      %p126 = pneg %p120
      %p127 = scmp.eq.s32.totalorder %s17, 1
      %p128 = por %p126, %p127
      %p129 = scmp.ne.s32.totalorder %s121, %s124
      %p130 = scmp.eq.s32.totalorder %s17, 0
      %p131 = por %p129, %p130
      %p132 = scmp.ne.s32.totalorder %s121, %s124
      %p133 = scmp.eq.s32.totalorder %s22, 1
      %p134 = por %p132, %p133
      %p135 = scmp.ne.s32.totalorder %s124, %s125
      %p136 = scmp.eq.s32.totalorder %s22, 0
      %p137 = por %p135, %p136
      %p138 = scmp.ne.s32.totalorder %s124, %s125
      %p139 = scmp.eq.s32.totalorder %s23, 1
      %p140 = por %p138, %p139
      %p142 = scmp.ne.s32.totalorder %s125, %s141
      %p143 = scmp.eq.s32.totalorder %s23, 0
      %p144 = por %p142, %p143
      %p145 = scmp.le.s32.totalorder 1, %s17
      %p146 = scmp.lt.s32.totalorder %s17, 3
      %p147 = pnand %p145, %p146
      %p148 = pneg %p147
      // Predicated region
      $region9: #{tpu_custom_call.1} parent=5 // pred_check
        _
      $region10: #{tpu_custom_call.1} parent=5 // pred_check_branch
        %150 = sbr.rel (%p147) target = $region12
      $region11: #{tpu_custom_call.1} parent=5 // pred_region
        %s151 = ssub.s32 %s17, 1
        // Predicated region
        $region13: #{tpu_custom_call.1} parent=11 // pred_check
          %p152 = pneg %p64
        $region14: #{tpu_custom_call.1} parent=11 // pred_check_branch
          %154 = sbr.rel (%p152) target = $region16
        $region15: #{tpu_custom_call.1} parent=11 // pred_region
          _
        $region16: #{tpu_custom_call.1} parent=11 // pred_fallthru
          _
        // Predicated region
        $region17: #{tpu_custom_call.1} parent=11 // pred_check
          %p155 = pneg %p85
        $region18: #{tpu_custom_call.1} parent=11 // pred_check_branch
          %157 = sbr.rel (%p155) target = $region20
        $region19: #{tpu_custom_call.1} parent=11 // pred_region
          _
        $region20: #{tpu_custom_call.1} parent=11 // pred_fallthru
          _
      $region12: #{tpu_custom_call.1} parent=5 // pred_fallthru
        _
      %p158 = scmp.lt.s32.totalorder %s17, 2
      // Predicated region
      $region21: #{tpu_custom_call.1} parent=5 // pred_check
        %p159 = pneg %p158
      $region22: #{tpu_custom_call.1} parent=5 // pred_check_branch
        %161 = sbr.rel (%p159) target = $region24
      $region23: #{tpu_custom_call.1} parent=5 // pred_region
        // Predicated region
        $region25: #{tpu_custom_call.1} parent=23 // pred_check
          %p162 = pneg %p37
        $region26: #{tpu_custom_call.1} parent=23 // pred_check_branch
          %164 = sbr.rel (%p162) target = $region28
        $region27: #{tpu_custom_call.1} parent=23 // pred_region
          %p165 = scmp.lt.s32.totalorder %s17, 1
          %s166 = scalar_select %p165, %s17, 1
          %s167 = smul.addr %s166, 56
          %s168 = smul.addr %s167, 8
          %s169 = scalar_lea.vmem %s0, %s168
        $region28: #{tpu_custom_call.1} parent=23 // pred_fallthru
          _
      $region24: #{tpu_custom_call.1} parent=5 // pred_fallthru
        _
      %p170 = scmp.le.s32.totalorder 1, %s17
      %p171 = scmp.lt.s32.totalorder %s17, 3
      %p172 = pnand %p170, %p171
      %p173 = pneg %p172
      // Predicated region
      $region29: #{tpu_custom_call.1} parent=5 // pred_check
        _
      $region30: #{tpu_custom_call.1} parent=5 // pred_check_branch
        %175 = sbr.rel (%p172) target = $region32
      $region31: #{tpu_custom_call.1} parent=5 // pred_region
        %s176 = ssub.s32 %s17, 1
        %p177 = scmp.lt.s32.totalorder %s22, 1
        %s178 = scalar_select %p177, %s22, 1
        %s179 = smul.addr %s178, 56
        %s180 = smul.addr %s179, 8
        %s181 = scalar_lea.vmem %s0, %s180
        %p182 = pneg %p43
        %p183 = pneg %p40
        %p184 = pneg %p64
        %p185 = pneg %p61
        %p186 = pneg %p85
        %p187 = pneg %p82
        %p188 = pneg %p111
        %p189 = pneg %p108
        %s190 = sand.u32 %s98, 1
        %s191 = scalar_lea.sflag [#allocation3], %s190
        %s192 = sand.u32 %s98, 1
        %s193 = smul.addr %s192, 32
        %s194 = scalar_lea.vmem [#allocation2], %s193
        %p195 = pneg %p137
        %p196 = pneg %p134
        %s197 = sand.u32 %s124, 1
        %s198 = scalar_lea.sflag [#allocation5], %s197
        %s199 = sand.u32 %s124, 1
        %s200 = smul.addr %s199, 32
        %s201 = scalar_lea.vmem [#allocation4], %s200
        %p202 = scmp.lt.s32.totalorder %s22, 1
        %s203 = scalar_select %p202, %s22, 1
        %s204 = smul.addr %s203, 56
        %s205 = smul.addr %s204, 8
        %s206 = scalar_lea.vmem %s0, %s205
        %v207 = vld [vmem:[%s1] sm:$0xff]
        %v208 = vld [vmem:[%s206] sm:$0xff]
        %v209 = vld [vmem:[%s206 + $0x8] sm:$0xff]
        %v210 = vld [vmem:[%s206 + $0x10] sm:$0xff]
        %v211 = vld [vmem:[%s206 + $0x18] sm:$0xff]
        %v212 = vld [vmem:[%s206 + $0x20] sm:$0xff]
        %v213 = vld [vmem:[%s206 + $0x28] sm:$0xff]
        %v214 = vld [vmem:[%s206 + $0x30] sm:$0xff]
        %v215 = vld [vmem:[%s206 + $0x38] sm:$0xff]
        %v216 = vld [vmem:[%s206 + $0x40] sm:$0xff]
        %v217 = vld [vmem:[%s206 + $0x48] sm:$0xff]
        %v218 = vld [vmem:[%s206 + $0x50] sm:$0xff]
        %v219 = vld [vmem:[%s206 + $0x58] sm:$0xff]
        %v220 = vld [vmem:[%s206 + $0x60] sm:$0xff]
        %v221 = vld [vmem:[%s206 + $0x68] sm:$0xff]
        %v222 = vld [vmem:[%s206 + $0x70] sm:$0xff]
        %v223 = vld [vmem:[%s206 + $0x78] sm:$0xff]
        %v224 = vld [vmem:[%s206 + $0x80] sm:$0xff]
        %v225 = vld [vmem:[%s206 + $0x88] sm:$0xff]
        %v226 = vld [vmem:[%s206 + $0x90] sm:$0xff]
        %v227 = vld [vmem:[%s206 + $0x98] sm:$0xff]
        %v228 = vld [vmem:[%s206 + $0xa0] sm:$0xff]
        %v229 = vld [vmem:[%s206 + $0xa8] sm:$0xff]
        %v230 = vld [vmem:[%s206 + $0xb0] sm:$0xff]
        %v231 = vld [vmem:[%s206 + $0xb8] sm:$0xff]
        %v232 = vld [vmem:[%s206 + $0xc0] sm:$0xff]
        %v233 = vld [vmem:[%s206 + $0xc8] sm:$0xff]
        %v234 = vld [vmem:[%s206 + $0xd0] sm:$0xff]
        %v235 = vld [vmem:[%s206 + $0xd8] sm:$0xff]
        %v236 = vld [vmem:[%s206 + $0xe0] sm:$0xff]
        %v237 = vld [vmem:[%s206 + $0xe8] sm:$0xff]
        %v238 = vld [vmem:[%s206 + $0xf0] sm:$0xff]
        %v239 = vld [vmem:[%s206 + $0xf8] sm:$0xff]
        %v240 = vld [vmem:[%s206 + $0x100] sm:$0xff]
        %v241 = vld [vmem:[%s206 + $0x108] sm:$0xff]
        %v242 = vld [vmem:[%s206 + $0x110] sm:$0xff]
        %v243 = vld [vmem:[%s206 + $0x118] sm:$0xff]
        %v244 = vld [vmem:[%s206 + $0x120] sm:$0xff]
        %v245 = vld [vmem:[%s206 + $0x128] sm:$0xff]
        %v246 = vld [vmem:[%s206 + $0x130] sm:$0xff]
        %v247 = vld [vmem:[%s206 + $0x138] sm:$0xff]
        %v248 = vld [vmem:[%s206 + $0x140] sm:$0xff]
        %v249 = vld [vmem:[%s206 + $0x148] sm:$0xff]
        %v250 = vld [vmem:[%s206 + $0x150] sm:$0xff]
        %v251 = vld [vmem:[%s206 + $0x158] sm:$0xff]
        %v252 = vld [vmem:[%s206 + $0x160] sm:$0xff]
        %v253 = vld [vmem:[%s206 + $0x168] sm:$0xff]
        %v254 = vld [vmem:[%s206 + $0x170] sm:$0xff]
        %v255 = vld [vmem:[%s206 + $0x178] sm:$0xff]
        %v256 = vld [vmem:[%s206 + $0x180] sm:$0xff]
        %v257 = vld [vmem:[%s206 + $0x188] sm:$0xff]
        %v258 = vld [vmem:[%s206 + $0x190] sm:$0xff]
        %v259 = vld [vmem:[%s206 + $0x198] sm:$0xff]
        %v260 = vld [vmem:[%s206 + $0x1a0] sm:$0xf]
        %v261 = vld [vmem:[%s206 + $0x1a8] sm:$0xf]
        %v262 = vld [vmem:[%s206 + $0x1b0] sm:$0xf]
        %v263 = vld [vmem:[%s206 + $0x1b8] sm:$0xf]
        %v264 = vld [vmem:[%s2] sm:$0xff]
        %266 = vset.pattern.permute.xlu0 0
        %267 = vperm.xlu0 %266, %v264
        %v268 = vpop.permute.xlu0 %267
        %vm270 = vcmask 883712
        %v272 = vsel %vm270, %v207, 0
        %vm274 = vcmask 1043456
        %v276 = vsel %vm274, %v260, 0
        %v279 = vsel %vm274, %v261, 0
        %v282 = vsel %vm274, %v262, 0
        %v285 = vsel %vm274, %v263, 0
        %287 = vmatprep.subr.mxu0 %v209
        %288 = vmatpush1.msra.mxu0 %v208
        %289 = vmatprep.subr.mxu0 %v213
        %290 = vmatpush1.msra.mxu0 %v212
        %291 = vmatprep.subr.mxu0 %v217
        %292 = vmatpush1.msra.mxu0 %v216
        %293 = vmatprep.subr.mxu0 %v221
        %294 = vmatpush1.msra.mxu0 %v220
        %295 = vmatprep.subr.mxu0 %v225
        %296 = vmatpush1.msra.mxu0 %v224
        %297 = vmatprep.subr.mxu0 %v229
        %298 = vmatpush1.msra.mxu0 %v228
        %299 = vmatprep.subr.mxu0 %v233
        %300 = vmatpush1.msra.mxu0 %v232
        %301 = vmatprep.subr.mxu0 %v237
        %302 = vmatpush1.msra.mxu0 %v236
        %303 = vmatprep.subr.mxu0 %v241
        %304 = vmatpush1.msra.mxu0 %v240
        %305 = vmatprep.subr.mxu0 %v245
        %306 = vmatpush1.msra.mxu0 %v244
        %307 = vmatprep.subr.mxu0 %v249
        %308 = vmatpush1.msra.mxu0 %v248
        %309 = vmatprep.subr.mxu0 %v253
        %310 = vmatpush1.msra.mxu0 %v252
        %311 = vmatprep.subr.mxu0 %v257
        %312 = vmatpush1.msra.mxu0 %v256
        %313 = vmatprep.subr.mxu0 %v279
        %314 = vmatpush1.msra.mxu0 %v276
        %315 = vmatprep.subr.mxu0 0.0
        %316 = vmatpush1.msra.mxu0 0.0
        %317 = vmatprep.subr.mxu0 0.0
        %318 = vmatpush1.msra.mxu0 0.0
        %319 = vmatprep.subr.mxu0 0.0
        %320 = vmatpush1.msra.mxu0 0.0
        %321 = vmatprep.subr.mxu0 0.0
        %322 = vmatpush1.msra.mxu0 0.0
        %323 = vmatprep.subr.mxu0 0.0
        %324 = vmatpush1.msra.mxu0 0.0
        %325 = vmatprep.subr.mxu0 0.0
        %326 = vmatpush1.msra.mxu0 0.0
        %327 = vmatprep.subr.mxu0 0.0
        %328 = vmatpush1.msra.mxu0 0.0
        %329 = vmatprep.subr.mxu0 0.0
        %330 = vmatpush1.msra.mxu0 0.0
        %331 = vmatprep.subr.mxu0 0.0
        %332 = vmatpush1.msra.mxu0 0.0
        %333 = vmatprep.subr.mxu0 0.0
        %334 = vmatpush1.msra.mxu0 0.0
        %335 = vmatprep.subr.mxu0 0.0
        %336 = vmatpush1.msra.mxu0 0.0
        %337 = vmatprep.subr.mxu0 0.0
        %338 = vmatpush1.msra.mxu0 0.0
        %339 = vmatprep.subr.mxu0 0.0
        %340 = vmatpush1.msra.mxu0 0.0
        %341 = vmatprep.subr.mxu0 0.0
        %342 = vmatpush1.msra.mxu0 0.0
        %343 = vmatprep.subr.mxu0 0.0
        %344 = vmatpush1.msra.mxu0 0.0
        %345 = vmatprep.subr.mxu0 0.0
        %346 = vmatpush1.msra.mxu0 0.0
        %347 = vmatprep.subr.mxu0 0.0
        %348 = vmatpush1.msra.mxu0 0.0
        %349 = vmatprep.subr.mxu0 0.0
        %350 = vmatpush1.msra.mxu0 0.0
        %351 = vmatprep.mubr.f32.mxu0 0.0
        %352 = vmatmul.mubr.f32.gmra.mrb[0].mxu0 %v272
        %v353 = vpop.f32.mrb[0].mxu0
        %v354 = vadd.f32 %v268, %v353
        %v355 = vpop.f32.mrb[0].mxu0
        %v356 = vadd.f32 %v268, %v355
        %357 = vdwg.mxu0
        %358 = vmatprep.subr.mxu0 %v211
        %359 = vmatpush1.msra.mxu0 %v210
        %360 = vmatprep.subr.mxu0 %v215
        %361 = vmatpush1.msra.mxu0 %v214
        %362 = vmatprep.subr.mxu0 %v219
        %363 = vmatpush1.msra.mxu0 %v218
        %364 = vmatprep.subr.mxu0 %v223
        %365 = vmatpush1.msra.mxu0 %v222
        %366 = vmatprep.subr.mxu0 %v227
        %367 = vmatpush1.msra.mxu0 %v226
        %368 = vmatprep.subr.mxu0 %v231
        %369 = vmatpush1.msra.mxu0 %v230
        %370 = vmatprep.subr.mxu0 %v235
        %371 = vmatpush1.msra.mxu0 %v234
        %372 = vmatprep.subr.mxu0 %v239
        %373 = vmatpush1.msra.mxu0 %v238
        %374 = vmatprep.subr.mxu0 %v243
        %375 = vmatpush1.msra.mxu0 %v242
        %376 = vmatprep.subr.mxu0 %v247
        %377 = vmatpush1.msra.mxu0 %v246
        %378 = vmatprep.subr.mxu0 %v251
        %379 = vmatpush1.msra.mxu0 %v250
        %380 = vmatprep.subr.mxu0 %v255
        %381 = vmatpush1.msra.mxu0 %v254
        %382 = vmatprep.subr.mxu0 %v259
        %383 = vmatpush1.msra.mxu0 %v258
        %384 = vmatprep.subr.mxu0 %v285
        %385 = vmatpush1.msra.mxu0 %v282
        %386 = vmatprep.subr.mxu0 0.0
        %387 = vmatpush1.msra.mxu0 0.0
        %388 = vmatprep.subr.mxu0 0.0
        %389 = vmatpush1.msra.mxu0 0.0
        %390 = vmatprep.subr.mxu0 0.0
        %391 = vmatpush1.msra.mxu0 0.0
        %392 = vmatprep.subr.mxu0 0.0
        %393 = vmatpush1.msra.mxu0 0.0
        %394 = vmatprep.subr.mxu0 0.0
        %395 = vmatpush1.msra.mxu0 0.0
        %396 = vmatprep.subr.mxu0 0.0
        %397 = vmatpush1.msra.mxu0 0.0
        %398 = vmatprep.subr.mxu0 0.0
        %399 = vmatpush1.msra.mxu0 0.0
        %400 = vmatprep.subr.mxu0 0.0
        %401 = vmatpush1.msra.mxu0 0.0
        %402 = vmatprep.subr.mxu0 0.0
        %403 = vmatpush1.msra.mxu0 0.0
        %404 = vmatprep.subr.mxu0 0.0
        %405 = vmatpush1.msra.mxu0 0.0
        %406 = vmatprep.subr.mxu0 0.0
        %407 = vmatpush1.msra.mxu0 0.0
        %408 = vmatprep.subr.mxu0 0.0
        %409 = vmatpush1.msra.mxu0 0.0
        %410 = vmatprep.subr.mxu0 0.0
        %411 = vmatpush1.msra.mxu0 0.0
        %412 = vmatprep.subr.mxu0 0.0
        %413 = vmatpush1.msra.mxu0 0.0
        %414 = vmatprep.subr.mxu0 0.0
        %415 = vmatpush1.msra.mxu0 0.0
        %416 = vmatprep.subr.mxu0 0.0
        %417 = vmatpush1.msra.mxu0 0.0
        %418 = vmatprep.subr.mxu0 0.0
        %419 = vmatpush1.msra.mxu0 0.0
        %420 = vmatprep.subr.mxu0 0.0
        %421 = vmatpush1.msra.mxu0 0.0
        %422 = vmatprep.mubr.f32.mxu0 0.0
        %423 = vmatmul.mubr.f32.gmra.mrb[0].mxu0 %v272
        %v424 = vpop.f32.mrb[0].mxu0
        %v425 = vadd.f32 %v268, %v424
        %v426 = vpop.f32.mrb[0].mxu0
        %v427 = vadd.f32 %v268, %v426
        %428 = vdwg.mxu0
        %vm429 = vcmp.gt.f32.partialorder %v354, 0.3
        %vm430 = vcmp.gt.f32.partialorder %v356, 0.3
        %vm431 = vcmp.gt.f32.partialorder %v425, 0.3
        %vm432 = vcmp.gt.f32.partialorder %v427, 0.3
        %v433 = vsel %vm429, 1, 0
        %v434 = vsel %vm430, 1, 0
        %v435 = vsel %vm431, 1, 0
        %v436 = vsel %vm432, 1, 0
        %v437 = vcvt.s32.f32 %v433
        %v438 = vcvt.s32.f32 %v434
        %v439 = vcvt.s32.f32 %v435
        %v440 = vcvt.s32.f32 %v436
        %441 = vst [vmem:[%s194] sm:$0xff] %v437
        %442 = vst [vmem:[%s194 + $0x8] sm:$0xff] %v438
        %443 = vst [vmem:[%s194 + $0x10] sm:$0xff] %v439
        %444 = vst [vmem:[%s194 + $0x18] sm:$0xff] %v440
        %v445 = vmul.f32 %v354, 0.2
        %v446 = vmul.f32 %v356, 0.2
        %v447 = vmul.f32 %v425, 0.2
        %v448 = vmul.f32 %v427, 0.2
        %v449 = vsub.f32 1.0, %v437
        %v450 = vsub.f32 1.0, %v438
        %v451 = vsub.f32 1.0, %v439
        %v452 = vsub.f32 1.0, %v440
        %v453 = vmul.f32 %v445, %v449
        %v454 = vmul.f32 %v446, %v450
        %v455 = vmul.f32 %v447, %v451
        %v456 = vmul.f32 %v448, %v452
        %457 = vst [vmem:[%s201] sm:$0xff] %v453
        %458 = vst [vmem:[%s201 + $0x8] sm:$0xff] %v454
        %459 = vst [vmem:[%s201 + $0x10] sm:$0xff] %v455
        %460 = vst [vmem:[%s201 + $0x18] sm:$0xff] %v456
        %s461 = sand.u32 %s98, 1
        %s462 = scalar_lea.sflag [#allocation3], %s461
        %s463 = sand.u32 %s98, 1
        %s464 = smul.addr %s463, 32
        %s465 = scalar_lea.vmem [#allocation2], %s464
        %s466 = sand.u32 %s124, 1
        %s467 = scalar_lea.sflag [#allocation5], %s466
        %s468 = sand.u32 %s124, 1
        %s469 = smul.addr %s468, 32
        %s470 = scalar_lea.vmem [#allocation4], %s469
        // Predicated region
        $region33: #{tpu_custom_call.1} parent=31 // pred_check
          %p471 = pneg %p108
        $region34: #{tpu_custom_call.1} parent=31 // pred_check_branch
          %473 = sbr.rel (%p471) target = $region36
        $region35: #{tpu_custom_call.1} parent=31 // pred_region
          %s475 = ssub.s32 512, 512
          %476 = vsyncadd %s462, %s475
          %s477 = smul.addr %s22, 4
          %s478 = smul.addr %s477, 128
          %s479 = scalar_lea.hbm %s3, %s478
          %s481 = sshll.u32 %s465, 4
          %s482 = int_to_ptr.vmem [resolvable:$true] %s481
          %484 = dma.vmem_to_hbm [thread:$0]  %s482, 512, %s479, %s462
        $region36: #{tpu_custom_call.1} parent=31 // pred_fallthru
          _
        // Predicated region
        $region37: #{tpu_custom_call.1} parent=31 // pred_check
          %p485 = pneg %p134
        $region38: #{tpu_custom_call.1} parent=31 // pred_check_branch
          %487 = sbr.rel (%p485) target = $region40
        $region39: #{tpu_custom_call.1} parent=31 // pred_region
          %s489 = ssub.s32 512, 512
          %490 = vsyncadd %s467, %s489
          %s491 = smul.addr %s22, 4
          %s492 = smul.addr %s491, 128
          %s493 = scalar_lea.hbm %s4, %s492
          %s495 = sshll.u32 %s470, 4
          %s496 = int_to_ptr.vmem [resolvable:$true] %s495
          %498 = dma.vmem_to_hbm [thread:$0]  %s496, 512, %s493, %s467
        $region40: #{tpu_custom_call.1} parent=31 // pred_fallthru
          _
      $region32: #{tpu_custom_call.1} parent=5 // pred_fallthru
        _
      %p499 = scmp.le.s32.totalorder 2, %s17
      // Predicated region
      $region41: #{tpu_custom_call.1} parent=5 // pred_check
        %p500 = pneg %p499
      $region42: #{tpu_custom_call.1} parent=5 // pred_check_branch
        %502 = sbr.rel (%p500) target = $region44
      $region43: #{tpu_custom_call.1} parent=5 // pred_region
        %s503 = ssub.s32 %s17, 2
        // Predicated region
        $region45: #{tpu_custom_call.1} parent=43 // pred_check
          %p504 = pneg %p114
        $region46: #{tpu_custom_call.1} parent=43 // pred_check_branch
          %506 = sbr.rel (%p504) target = $region48
        $region47: #{tpu_custom_call.1} parent=43 // pred_region
          %s507 = sand.u32 %s99, 1
          %s508 = scalar_lea.sflag [#allocation3], %s507
          %s509 = sand.u32 %s99, 1
          %s510 = smul.addr %s509, 32
          %s511 = scalar_lea.vmem [#allocation2], %s510
          %512 = dma.done %s508, 512
        $region48: #{tpu_custom_call.1} parent=43 // pred_fallthru
          _
        // Predicated region
        $region49: #{tpu_custom_call.1} parent=43 // pred_check
          %p513 = pneg %p140
        $region50: #{tpu_custom_call.1} parent=43 // pred_check_branch
          %515 = sbr.rel (%p513) target = $region52
        $region51: #{tpu_custom_call.1} parent=43 // pred_region
          %s516 = sand.u32 %s125, 1
          %s517 = scalar_lea.sflag [#allocation5], %s516
          %s518 = sand.u32 %s125, 1
          %s519 = smul.addr %s518, 32
          %s520 = scalar_lea.vmem [#allocation4], %s519
          %521 = dma.done %s517, 512
        $region52: #{tpu_custom_call.1} parent=43 // pred_fallthru
          _
      $region44: #{tpu_custom_call.1} parent=5 // pred_fallthru
        _
    $region6: #{tpu_custom_call.1} parent=1 // loop_footer
      %s21 = sadd.s32 1, %s17
    $region7: #{tpu_custom_call.1} parent=1 // loop_footer_branch
      %16 = sbr.rel target = $region3
    $region8: #{tpu_custom_call.1} parent=1 // loop_exit
      _
    %522 = vsyncpa [#allocation3], 1
    %s523 = scalar_lea.sflag [#allocation3], 1
    %524 = vsyncpa %s523, 1
    %525 = vsyncpa [#allocation5], 1
    %s526 = scalar_lea.sflag [#allocation5], 1
    %527 = vsyncpa %s526, 1

</llo_original>
